<compile_context>
chip_gen: v7x
topology: tpu7x:2x2x1
jax: 0.10.0
libtpu: 0.0.40
codegen_flags: <defaults>
</compile_context>

<pallas_src>
import jax
import jax.numpy as jnp
from jax import lax
from jax.experimental import pallas as pl
from jax.experimental.pallas import tpu as pltpu

EPS = 1e-5  # nn.BatchNorm2d default eps


# ----------------------------------------------------------------------------
# Fused per-batch kernel (grid = (B,), one batch element per step):
#   lang  : (1, E)       language embedding row for this batch element
#   img   : (Cin, HW)    this batch element's NCHW image, spatial flattened
#   w1    : (E, 2Hm)     concatenated first-layer weights of weight_mlp | bias_mlp
#   b1    : (1, 2Hm)     concatenated first-layer biases
#   w2w   : (Hm, C)      weight_mlp second layer (no bias)
#   w2b   : (Hm, C)      bias_mlp   second layer (no bias)
#   bn_w  : (1, C)       frozen bn.weight        bn_b  : (1, C) frozen bn.bias
#   mean  : (1, C)       running_mean            var   : (1, C) running_var
#   stem_t: (Cin, C)     1x1-conv stem weight, pre-transposed (stand-in backbone)
#   out   : (1, C)       pooled FiLMed features for this batch element (lane-dense)
# ----------------------------------------------------------------------------
def film_fused_kernel(lang_ref, img_ref, w1_ref, b1_ref, w2w_ref, w2b_ref,
                      bnw_ref, bnb_ref, mean_ref, var_ref, stemt_ref, out_ref):
    Hm = w2w_ref.shape[0]
    HW = img_ref.shape[1]

    # ---- FiLM MLPs, lane-dense over features; two half-K dots (no block-diag padding).
    h = jnp.maximum(
        jnp.dot(lang_ref[...], w1_ref[...], preferred_element_type=jnp.float32)
        + b1_ref[...], 0.0)                                                # (1, 2Hm)
    d_w = jnp.dot(h[:, :Hm], w2w_ref[...], preferred_element_type=jnp.float32)  # (1, C)
    d_b = jnp.dot(h[:, Hm:], w2b_ref[...], preferred_element_type=jnp.float32)  # (1, C)
    film_w = bnw_ref[...] + d_w                                            # (1, C)
    film_b = bnb_ref[...] + d_b                                            # (1, C)

    # ---- fold FiLM + "BN" into one per-channel affine.
    # NOTE: divides by (var + eps) with NO sqrt -- intentionally mirrors the PyTorch source.
    inv_var = 1.0 / (var_ref[...] + EPS)                                   # (1, C), tiny
    scale = film_w * inv_var                                               # (1, C)
    shift = film_b - film_w * (mean_ref[...] * inv_var)                    # (1, C)

    # ---- 1x1-conv stem: LHS-transposed matmul, result already feature-lane-dense.
    # TODO(synk): cast operands to bf16 (keep f32 accumulate) once a realistic backbone
    # conv (Cin, C in the hundreds) replaces this toy stem.
    feat = lax.dot_general(img_ref[...], stemt_ref[...],
                           dimension_numbers=(((0,), (0,)), ((), ())),
                           preferred_element_type=jnp.float32)             # (HW, C)

    # ---- affine + ReLU + global average pool over HW; one lane-dense (1, C) store.
    act = jnp.maximum(feat * scale + shift, 0.0)                           # (HW, C)
    out_ref[...] = jnp.sum(act, axis=0, keepdims=True) * (1.0 / HW)        # (1, C)


# ----------------------------------------------------------------------------
# Parameter packing -- call ONCE at param-prep time (hoisted out of the forward path).
# ----------------------------------------------------------------------------
def pack_film_params(p):
    C = p["stem_w"].shape[0]
    return {
        "w1":     jnp.concatenate([p["w1w"], p["w1b"]], axis=1),  # (E, 2Hm)
        "b1":     jnp.concatenate([p["b1w"], p["b1b"]], axis=1),  # (1, 2Hm)
        "w2w":    p["w2w"],                                       # (Hm, C)
        "w2b":    p["w2b"],                                       # (Hm, C)
        "bn_w":   p["bn_w"],                                      # (1, C)
        "bn_b":   p["bn_b"],                                      # (1, C)
        "mean":   p["running_mean"].reshape(1, C),                # (1, C)
        "var":    p["running_var"].reshape(1, C),                 # (1, C)
        "stem_t": p["stem_w"].T,                                  # (Cin, C)
    }


def film_wrapper_forward(image, lang, pk):
    """image: (B, Cin, H, W) NCHW f32; lang: (B, E) f32; pk: pack_film_params(...) -> (B, C)."""
    B, Cin, H, W = image.shape
    HW = H * W
    E = lang.shape[1]
    Hm2 = pk["w1"].shape[1]
    Hm = Hm2 // 2
    C = pk["w2w"].shape[1]

    # Layout-preserving reshapes only (no transposes, no data movement of note).
    img3 = image.reshape(B, Cin, HW)     # (B, Cin, HW)
    lang3 = lang.reshape(B, 1, E)        # (B, 1, E)

    def param_spec(shape):
        # Full-array block, same block every grid step -> fetched once, never re-DMA'd.
        return pl.BlockSpec(shape, lambda b: (0, 0))

    out3 = pl.pallas_call(
        film_fused_kernel,
        grid=(B,),
        in_specs=[
            pl.BlockSpec((None, 1, E), lambda b: (b, 0, 0)),       # lang row
            pl.BlockSpec((None, Cin, HW), lambda b: (b, 0, 0)),    # per-batch image block
            param_spec((E, Hm2)),     # w1
            param_spec((1, Hm2)),     # b1
            param_spec((Hm, C)),      # w2w
            param_spec((Hm, C)),      # w2b
            param_spec((1, C)),       # bn_w
            param_spec((1, C)),       # bn_b
            param_spec((1, C)),       # running_mean
            param_spec((1, C)),       # running_var
            param_spec((Cin, C)),     # stem_t
        ],
        out_specs=pl.BlockSpec((None, 1, C), lambda b: (b, 0, 0)),
        out_shape=jax.ShapeDtypeStruct((B, 1, C), jnp.float32),
        compiler_params=pltpu.CompilerParams(
            dimension_semantics=("parallel",)),
    )(lang3, img3, pk["w1"], pk["b1"], pk["w2w"], pk["w2b"],
      pk["bn_w"], pk["bn_b"], pk["mean"], pk["var"], pk["stem_t"])

    return out3.reshape(B, C)


# ----------------------------------------------------------------------------
# Pure-JAX reference for correctness checking (mirrors the PyTorch module literally).
# ----------------------------------------------------------------------------
def reference_forward(image, lang, p):
    B, Cin, H, W = image.shape
    hw_ = jax.nn.relu(lang @ p["w1w"] + p["b1w"])
    dw = hw_ @ p["w2w"]
    hb = jax.nn.relu(lang @ p["w1b"] + p["b1b"])
    db = hb @ p["w2b"]
    fw = p["bn_w"] + dw
    fb = p["bn_b"] + db
    img = image.reshape(B, Cin, H * W)
    feat = jnp.einsum("ci,bis->bcs", p["stem_w"], img)
    norm = (fw[:, :, None] * ((feat - p["running_mean"][None, :, None])
                              / (p["running_var"][None, :, None] + EPS))
            + fb[:, :, None])
    return jnp.maximum(norm, 0.0).mean(-1)


if __name__ == "__main__":
    # small shapes consistent with the module's forward
    B, Cin, H, W = 2, 4, 16, 16          # image NCHW
    E = 32                               # langugae_embedding_size
    Hm = 32                              # mlp_hidden_size
    C = 8                                # bn num_features / out features

    key = jax.random.PRNGKey(0)
    ks = jax.random.split(key, 12)

    image = jax.random.normal(ks[0], (B, Cin, H, W), dtype=jnp.float32)
    lang = jax.random.normal(ks[1], (B, E), dtype=jnp.float32)

    params = {
        # weight_mlp: Linear(E->Hm, bias=True) -> ReLU -> Linear(Hm->C, bias=False)
        "w1w": 0.1 * jax.random.normal(ks[2], (E, Hm), dtype=jnp.float32),
        "b1w": 0.1 * jax.random.normal(ks[3], (1, Hm), dtype=jnp.float32),
        "w2w": 0.1 * jax.random.normal(ks[4], (Hm, C), dtype=jnp.float32),
        # bias_mlp
        "w1b": 0.1 * jax.random.normal(ks[5], (E, Hm), dtype=jnp.float32),
        "b1b": 0.1 * jax.random.normal(ks[6], (1, Hm), dtype=jnp.float32),
        "w2b": 0.1 * jax.random.normal(ks[7], (Hm, C), dtype=jnp.float32),
        # frozen bn affine params (unsqueeze_(0) in the torch code -> shape (1, C))
        "bn_w": jnp.ones((1, C), dtype=jnp.float32)
                + 0.05 * jax.random.normal(ks[8], (1, C), dtype=jnp.float32),
        "bn_b": 0.05 * jax.random.normal(ks[9], (1, C), dtype=jnp.float32),
        # running stats (eval mode)
        "running_mean": 0.1 * jax.random.normal(ks[10], (C,), dtype=jnp.float32),
        "running_var": 0.5 + jax.random.uniform(ks[11], (C,), dtype=jnp.float32),
        # 1x1-conv stem standing in for the (frozen, pretrained) resnet backbone
        "stem_w": 0.2 * jax.random.normal(jax.random.PRNGKey(42), (C, Cin), dtype=jnp.float32),
    }

    packed = jax.block_until_ready(
        jax.tree_util.tree_map(jnp.asarray, pack_film_params(params)))  # param-prep, once

    out = jax.block_until_ready(film_wrapper_forward(image, lang, packed))
    ref = jax.block_until_ready(reference_forward(image, lang, params))

    assert out.shape == (B, C), out.shape
    assert jnp.allclose(out, ref, atol=1e-4, rtol=1e-4), (out, ref)
    print("KERNEL_OK")
</pallas_src>

<mosaic_0001>
module attributes {stable_mosaic.version = 11 : i64} {
  func.func @film_fused_kernel(%arg0: i32, %arg1: memref<1x1x32xf32, #tpu.memory_space<vmem>>, %arg2: memref<1x4x256xf32, #tpu.memory_space<vmem>>, %arg3: memref<32x64xf32, #tpu.memory_space<vmem>>, %arg4: memref<1x64xf32, #tpu.memory_space<vmem>>, %arg5: memref<32x8xf32, #tpu.memory_space<vmem>>, %arg6: memref<32x8xf32, #tpu.memory_space<vmem>>, %arg7: memref<1x8xf32, #tpu.memory_space<vmem>>, %arg8: memref<1x8xf32, #tpu.memory_space<vmem>>, %arg9: memref<1x8xf32, #tpu.memory_space<vmem>>, %arg10: memref<1x8xf32, #tpu.memory_space<vmem>>, %arg11: memref<4x8xf32, #tpu.memory_space<vmem>>, %arg12: memref<1x1x8xf32, #tpu.memory_space<vmem>>) attributes {dimension_semantics = [#tpu.dimension_semantics<parallel>], iteration_bounds = array<i64: 2>, scalar_prefetch = 0 : i64, scratch_operands = 0 : i64, tpu.core_type = #tpu.core_type<tc>, window_params = [{transform_indices = @transform_0, window_bounds = array<i64: 1, 1, 32>}, {transform_indices = @transform_1, window_bounds = array<i64: 1, 4, 256>}, {pipeline_mode = #tpu.pipeline_mode<synchronous>, transform_indices = @transform_2, window_bounds = array<i64: 32, 64>}, {pipeline_mode = #tpu.pipeline_mode<synchronous>, transform_indices = @transform_3, window_bounds = array<i64: 1, 64>}, {pipeline_mode = #tpu.pipeline_mode<synchronous>, transform_indices = @transform_4, window_bounds = array<i64: 32, 8>}, {pipeline_mode = #tpu.pipeline_mode<synchronous>, transform_indices = @transform_5, window_bounds = array<i64: 32, 8>}, {pipeline_mode = #tpu.pipeline_mode<synchronous>, transform_indices = @transform_6, window_bounds = array<i64: 1, 8>}, {pipeline_mode = #tpu.pipeline_mode<synchronous>, transform_indices = @transform_7, window_bounds = array<i64: 1, 8>}, {pipeline_mode = #tpu.pipeline_mode<synchronous>, transform_indices = @transform_8, window_bounds = array<i64: 1, 8>}, {pipeline_mode = #tpu.pipeline_mode<synchronous>, transform_indices = @transform_9, window_bounds = array<i64: 1, 8>}, {pipeline_mode = #tpu.pipeline_mode<synchronous>, transform_indices = @transform_10, window_bounds = array<i64: 4, 8>}, {transform_indices = @transform_11, window_bounds = array<i64: 1, 1, 8>}]} {
    %c0 = arith.constant 0 : index
    %c0_0 = arith.constant 0 : index
    %c0_1 = arith.constant 0 : index
    %0 = vector.load %arg1[%c0, %c0_0, %c0_1] : memref<1x1x32xf32, #tpu.memory_space<vmem>>, vector<1x1x32xf32>
    %1 = vector.shape_cast %0 : vector<1x1x32xf32> to vector<1x32xf32>
    %c0_2 = arith.constant 0 : index
    %c0_3 = arith.constant 0 : index
    %2 = vector.load %arg3[%c0_2, %c0_3] : memref<32x64xf32, #tpu.memory_space<vmem>>, vector<32x64xf32>
    %cst = arith.constant dense<0.000000e+00> : vector<1x64xf32>
    %3 = tpu.matmul %1, %2, %cst {dimension_numbers = #tpu.dot_dimension_numbers<[1], [0], [0], [1], [0, 0, 1, 1], [], []>} : vector<1x32xf32>, vector<32x64xf32>, vector<1x64xf32> -> vector<1x64xf32>
    %c0_4 = arith.constant 0 : index
    %c0_5 = arith.constant 0 : index
    %4 = vector.load %arg4[%c0_4, %c0_5] : memref<1x64xf32, #tpu.memory_space<vmem>>, vector<1x64xf32>
    %5 = arith.addf %3, %4 : vector<1x64xf32>
    %cst_6 = arith.constant 0.000000e+00 : f32
    %6 = vector.broadcast %cst_6 : f32 to vector<1x64xf32>
    %7 = arith.maximumf %5, %6 : vector<1x64xf32>
    %8 = vector.extract_strided_slice %7 {offsets = [0, 0], sizes = [1, 32], strides = [1, 1]} : vector<1x64xf32> to vector<1x32xf32>
    %c0_7 = arith.constant 0 : index
    %c0_8 = arith.constant 0 : index
    %9 = vector.load %arg5[%c0_7, %c0_8] : memref<32x8xf32, #tpu.memory_space<vmem>>, vector<32x8xf32>
    %cst_9 = arith.constant dense<0.000000e+00> : vector<1x8xf32>
    %10 = tpu.matmul %8, %9, %cst_9 {dimension_numbers = #tpu.dot_dimension_numbers<[1], [0], [0], [1], [0, 0, 1, 1], [], []>} : vector<1x32xf32>, vector<32x8xf32>, vector<1x8xf32> -> vector<1x8xf32>
    %11 = vector.extract_strided_slice %7 {offsets = [0, 32], sizes = [1, 32], strides = [1, 1]} : vector<1x64xf32> to vector<1x32xf32>
    %c0_10 = arith.constant 0 : index
    %c0_11 = arith.constant 0 : index
    %12 = vector.load %arg6[%c0_10, %c0_11] : memref<32x8xf32, #tpu.memory_space<vmem>>, vector<32x8xf32>
    %cst_12 = arith.constant dense<0.000000e+00> : vector<1x8xf32>
    %13 = tpu.matmul %11, %12, %cst_12 {dimension_numbers = #tpu.dot_dimension_numbers<[1], [0], [0], [1], [0, 0, 1, 1], [], []>} : vector<1x32xf32>, vector<32x8xf32>, vector<1x8xf32> -> vector<1x8xf32>
    %c0_13 = arith.constant 0 : index
    %c0_14 = arith.constant 0 : index
    %14 = vector.load %arg7[%c0_13, %c0_14] : memref<1x8xf32, #tpu.memory_space<vmem>>, vector<1x8xf32>
    %15 = arith.addf %14, %10 : vector<1x8xf32>
    %c0_15 = arith.constant 0 : index
    %c0_16 = arith.constant 0 : index
    %16 = vector.load %arg8[%c0_15, %c0_16] : memref<1x8xf32, #tpu.memory_space<vmem>>, vector<1x8xf32>
    %17 = arith.addf %16, %13 : vector<1x8xf32>
    %c0_17 = arith.constant 0 : index
    %c0_18 = arith.constant 0 : index
    %18 = vector.load %arg10[%c0_17, %c0_18] : memref<1x8xf32, #tpu.memory_space<vmem>>, vector<1x8xf32>
    %cst_19 = arith.constant 9.99999974E-6 : f32
    %19 = vector.broadcast %cst_19 : f32 to vector<1x8xf32>
    %20 = arith.addf %18, %19 : vector<1x8xf32>
    %cst_20 = arith.constant 1.000000e+00 : f32
    %21 = vector.broadcast %cst_20 : f32 to vector<1x8xf32>
    %22 = arith.divf %21, %20 : vector<1x8xf32>
    %23 = arith.mulf %15, %22 : vector<1x8xf32>
    %c0_21 = arith.constant 0 : index
    %c0_22 = arith.constant 0 : index
    %24 = vector.load %arg9[%c0_21, %c0_22] : memref<1x8xf32, #tpu.memory_space<vmem>>, vector<1x8xf32>
    %25 = arith.mulf %24, %22 : vector<1x8xf32>
    %26 = arith.mulf %15, %25 : vector<1x8xf32>
    %27 = arith.subf %17, %26 : vector<1x8xf32>
    %c0_23 = arith.constant 0 : index
    %c0_24 = arith.constant 0 : index
    %c0_25 = arith.constant 0 : index
    %28 = vector.load %arg2[%c0_23, %c0_24, %c0_25] : memref<1x4x256xf32, #tpu.memory_space<vmem>>, vector<1x4x256xf32>
    %29 = vector.shape_cast %28 : vector<1x4x256xf32> to vector<4x256xf32>
    %c0_26 = arith.constant 0 : index
    %c0_27 = arith.constant 0 : index
    %30 = vector.load %arg11[%c0_26, %c0_27] : memref<4x8xf32, #tpu.memory_space<vmem>>, vector<4x8xf32>
    %cst_28 = arith.constant dense<0.000000e+00> : vector<256x8xf32>
    %31 = tpu.matmul %29, %30, %cst_28 {dimension_numbers = #tpu.dot_dimension_numbers<[0], [0], [1], [1], [0, 1, 1, 1], [], []>} : vector<4x256xf32>, vector<4x8xf32>, vector<256x8xf32> -> vector<256x8xf32>
    %32 = vector.broadcast %23 : vector<1x8xf32> to vector<256x8xf32>
    %33 = arith.mulf %31, %32 : vector<256x8xf32>
    %34 = vector.broadcast %27 : vector<1x8xf32> to vector<256x8xf32>
    %35 = arith.addf %33, %34 : vector<256x8xf32>
    %cst_29 = arith.constant 0.000000e+00 : f32
    %36 = vector.broadcast %cst_29 : f32 to vector<256x8xf32>
    %37 = arith.maximumf %35, %36 : vector<256x8xf32>
    %cst_30 = arith.constant dense<0.000000e+00> : vector<8xf32>
    %38 = vector.multi_reduction <add>, %37, %cst_30 [0] : vector<256x8xf32> to vector<8xf32>
    %39 = vector.shape_cast %38 : vector<8xf32> to vector<1x8xf32>
    %cst_31 = arith.constant 3.906250e-03 : f32
    %40 = vector.broadcast %cst_31 : f32 to vector<1x8xf32>
    %41 = arith.mulf %39, %40 : vector<1x8xf32>
    %c0_32 = arith.constant 0 : index
    %c0_33 = arith.constant 0 : index
    %c0_34 = arith.constant 0 : index
    %42 = vector.load %arg12[%c0_32, %c0_33, %c0_34] : memref<1x1x8xf32, #tpu.memory_space<vmem>>, vector<1x1x8xf32>
    %43 = vector.shape_cast %42 : vector<1x1x8xf32> to vector<1x8xf32>
    %44 = vector.shape_cast %41 : vector<1x8xf32> to vector<1x1x8xf32>
    tpu.vector_store %arg12[%c0_32, %c0_33, %c0_34], %44 {strides = array<i32>} : memref<1x1x8xf32, #tpu.memory_space<vmem>>, vector<1x1x8xf32>,
    return
  }
  func.func @transform_0(%arg0: i32) -> (i32, i32, i32) {
    %c0_i32 = arith.constant 0 : i32
    %c0_i32_0 = arith.constant 0 : i32
    %c0_i32_1 = arith.constant 0 : i32
    return %arg0, %c0_i32, %c0_i32_0 : i32, i32, i32
  }
  func.func @transform_1(%arg0: i32) -> (i32, i32, i32) {
    %c0_i32 = arith.constant 0 : i32
    %c0_i32_0 = arith.constant 0 : i32
    %c0_i32_1 = arith.constant 0 : i32
    return %arg0, %c0_i32, %c0_i32_0 : i32, i32, i32
  }
  func.func @transform_2(%arg0: i32) -> (i32, i32) {
    %c0_i32 = arith.constant 0 : i32
    %c0_i32_0 = arith.constant 0 : i32
    %c0_i32_1 = arith.constant 0 : i32
    return %c0_i32, %c0_i32_0 : i32, i32
  }
  func.func @transform_3(%arg0: i32) -> (i32, i32) {
    %c0_i32 = arith.constant 0 : i32
    %c0_i32_0 = arith.constant 0 : i32
    %c0_i32_1 = arith.constant 0 : i32
    return %c0_i32, %c0_i32_0 : i32, i32
  }
  func.func @transform_4(%arg0: i32) -> (i32, i32) {
    %c0_i32 = arith.constant 0 : i32
    %c0_i32_0 = arith.constant 0 : i32
    %c0_i32_1 = arith.constant 0 : i32
    return %c0_i32, %c0_i32_0 : i32, i32
  }
  func.func @transform_5(%arg0: i32) -> (i32, i32) {
    %c0_i32 = arith.constant 0 : i32
    %c0_i32_0 = arith.constant 0 : i32
    %c0_i32_1 = arith.constant 0 : i32
    return %c0_i32, %c0_i32_0 : i32, i32
  }
  func.func @transform_6(%arg0: i32) -> (i32, i32) {
    %c0_i32 = arith.constant 0 : i32
    %c0_i32_0 = arith.constant 0 : i32
    %c0_i32_1 = arith.constant 0 : i32
    return %c0_i32, %c0_i32_0 : i32, i32
  }
  func.func @transform_7(%arg0: i32) -> (i32, i32) {
    %c0_i32 = arith.constant 0 : i32
    %c0_i32_0 = arith.constant 0 : i32
    %c0_i32_1 = arith.constant 0 : i32
    return %c0_i32, %c0_i32_0 : i32, i32
  }
  func.func @transform_8(%arg0: i32) -> (i32, i32) {
    %c0_i32 = arith.constant 0 : i32
    %c0_i32_0 = arith.constant 0 : i32
    %c0_i32_1 = arith.constant 0 : i32
    return %c0_i32, %c0_i32_0 : i32, i32
  }
  func.func @transform_9(%arg0: i32) -> (i32, i32) {
    %c0_i32 = arith.constant 0 : i32
    %c0_i32_0 = arith.constant 0 : i32
    %c0_i32_1 = arith.constant 0 : i32
    return %c0_i32, %c0_i32_0 : i32, i32
  }
  func.func @transform_10(%arg0: i32) -> (i32, i32) {
    %c0_i32 = arith.constant 0 : i32
    %c0_i32_0 = arith.constant 0 : i32
    %c0_i32_1 = arith.constant 0 : i32
    return %c0_i32, %c0_i32_0 : i32, i32
  }
  func.func @transform_11(%arg0: i32) -> (i32, i32, i32) {
    %c0_i32 = arith.constant 0 : i32
    %c0_i32_0 = arith.constant 0 : i32
    %c0_i32_1 = arith.constant 0 : i32
    return %arg0, %c0_i32, %c0_i32_0 : i32, i32, i32
  }
}

</mosaic_0001>

<llo_original>
// kernel: tpu_custom_call.1
$region0: #{tpu_custom_call.1}
  #allocation0 [shape = 'u32[]', space=smem, size = 0x4, offset = 0x4, fixed_abs, tag = 'smem constant byte address 0x4 - core index']
  #allocation1 [shape = 'u32[144,128]{1,0:T(1,128)}', space=vmem, size = 0x12000, scoped, tag = 'internal scratch']
  %s0 = inlined_call_operand.vmem [shape: f32[2,1,32], index: 0, kind: input, shape index: {}]
  %s1 = inlined_call_operand.vmem [shape: f32[2,4,256], index: 1, kind: input, shape index: {}]
  %s2 = inlined_call_operand.vmem [shape: f32[32,64], index: 2, kind: input, shape index: {}]
  %s3 = inlined_call_operand.vmem [shape: f32[1,64], index: 3, kind: input, shape index: {}]
  %s4 = inlined_call_operand.vmem [shape: f32[32,8], index: 4, kind: input, shape index: {}]
  %s5 = inlined_call_operand.vmem [shape: f32[32,8], index: 5, kind: input, shape index: {}]
  %s6 = inlined_call_operand.vmem [shape: f32[1,8], index: 6, kind: input, shape index: {}]
  %s7 = inlined_call_operand.vmem [shape: f32[1,8], index: 7, kind: input, shape index: {}]
  %s8 = inlined_call_operand.vmem [shape: f32[1,8], index: 8, kind: input, shape index: {}]
  %s9 = inlined_call_operand.vmem [shape: f32[1,8], index: 9, kind: input, shape index: {}]
  %s10 = inlined_call_operand.vmem [shape: f32[4,8], index: 10, kind: input, shape index: {}]
  %s11 = inlined_call_operand.hbm [shape: f32[2,1,8], index: 11, kind: output, shape index: {}]
  %s12 = sld [smem:[#allocation0]]
  $region77: #{tpu_custom_call.1} parent=0
    _
  %s14 = ssub.s32 1, %s12
  %s15 = scalar_select 0, %s14, %s12
  $region1: #{tpu_custom_call.1} parent=0
    #allocation2 [shape = 'u8[1024]{0}', space=vmem, size = 0x400, scoped, tag = 'output window, operand 0']
    #allocation3 [shape = 's32[2]{0}', space=sflag, size = 0x8, scoped, tag = 'scoped memory for tpu_custom_call.1']
    %16 = vsyncpa [#allocation3], 0
    %s17 = scalar_lea.sflag [#allocation3], 1
    %18 = vsyncpa %s17, 0
    loop: start=0, step=1, limit=4
    $region2: #{tpu_custom_call.1} parent=1 // loop_pre_header
      _
    $region3: #{tpu_custom_call.1} parent=1 // loop_header
      %s20 = sphi 0, %s24
      %p21 = scmp.ge.s32.totalorder %s20, 4
      %s30 = sphi 0, %s32
      %s33 = sphi 0, %s30
      %s34 = sphi 0, %s33
      %s50 = sphi 0, %s34
      %s56 = sphi 0, %s58
      %s59 = sphi 0, %s56
      %s60 = sphi 0, %s59
      %s76 = sphi 0, %s60
      %s80 = sphi 0, %s80
      %s82 = sphi 0, %s80
      %s83 = sphi 0, %s82
      %s97 = sphi 0, %s83
      %s101 = sphi 0, %s101
      %s103 = sphi 0, %s101
      %s104 = sphi 0, %s103
      %s118 = sphi 0, %s104
      %s122 = sphi 0, %s122
      %s124 = sphi 0, %s122
      %s125 = sphi 0, %s124
      %s139 = sphi 0, %s125
      %s143 = sphi 0, %s143
      %s145 = sphi 0, %s143
      %s146 = sphi 0, %s145
      %s160 = sphi 0, %s146
      %s164 = sphi 0, %s164
      %s166 = sphi 0, %s164
      %s167 = sphi 0, %s166
      %s181 = sphi 0, %s167
      %s185 = sphi 0, %s185
      %s187 = sphi 0, %s185
      %s188 = sphi 0, %s187
      %s202 = sphi 0, %s188
      %s206 = sphi 0, %s206
      %s208 = sphi 0, %s206
      %s209 = sphi 0, %s208
      %s223 = sphi 0, %s209
      %s227 = sphi 0, %s227
      %s229 = sphi 0, %s227
      %s230 = sphi 0, %s229
      %s244 = sphi 0, %s230
      %s248 = sphi 0, %s248
      %s250 = sphi 0, %s248
      %s251 = sphi 0, %s250
      %s265 = sphi 0, %s251
      %s271 = sphi 0, %s273
      %s274 = sphi 0, %s271
      %s275 = sphi 0, %s274
      %s291 = sphi 0, %s275
    $region4: #{tpu_custom_call.1} parent=1 // loop_header_branch
      %23 = sbr.rel (%p21) target = $region8
    $region5: #{tpu_custom_call.1} parent=1 // loop_body
      %s25 = ssub.s32 %s20, 1
      %s26 = ssub.s32 %s20, 2
      %s27 = sadd.s32 %s20, 1
      %s28 = ssub.s32 %s20, %s27
      %p29 = scmp.eq.s32.totalorder %s28, 0
      %s31 = sadd.s32 %s30, 1
      %s32 = scalar_select %p29, %s30, %s31
      %p35 = pneg %p29
      %p36 = scmp.eq.s32.totalorder %s20, 1
      %p37 = por %p35, %p36
      %p38 = scmp.ne.s32.totalorder %s30, %s33
      %p39 = scmp.eq.s32.totalorder %s20, 0
      %p40 = por %p38, %p39
      %p41 = scmp.ne.s32.totalorder %s30, %s33
      %p42 = scmp.eq.s32.totalorder %s25, 1
      %p43 = por %p41, %p42
      %p44 = scmp.ne.s32.totalorder %s33, %s34
      %p45 = scmp.eq.s32.totalorder %s25, 0
      %p46 = por %p44, %p45
      %p47 = scmp.ne.s32.totalorder %s33, %s34
      %p48 = scmp.eq.s32.totalorder %s26, 1
      %p49 = por %p47, %p48
      %p51 = scmp.ne.s32.totalorder %s34, %s50
      %p52 = scmp.eq.s32.totalorder %s26, 0
      %p53 = por %p51, %p52
      %s54 = ssub.s32 %s20, %s27
      %p55 = scmp.eq.s32.totalorder %s54, 0
      %s57 = sadd.s32 %s56, 1
      %s58 = scalar_select %p55, %s56, %s57
      %p61 = pneg %p55
      %p62 = scmp.eq.s32.totalorder %s20, 1
      %p63 = por %p61, %p62
      %p64 = scmp.ne.s32.totalorder %s56, %s59
      %p65 = scmp.eq.s32.totalorder %s20, 0
      %p66 = por %p64, %p65
      %p67 = scmp.ne.s32.totalorder %s56, %s59
      %p68 = scmp.eq.s32.totalorder %s25, 1
      %p69 = por %p67, %p68
      %p70 = scmp.ne.s32.totalorder %s59, %s60
      %p71 = scmp.eq.s32.totalorder %s25, 0
      %p72 = por %p70, %p71
      %p73 = scmp.ne.s32.totalorder %s59, %s60
      %p74 = scmp.eq.s32.totalorder %s26, 1
      %p75 = por %p73, %p74
      %p77 = scmp.ne.s32.totalorder %s60, %s76
      %p78 = scmp.eq.s32.totalorder %s26, 0
      %p79 = por %p77, %p78
      %s81 = sadd.s32 %s80, 1
      %p84 = scmp.eq.s32.totalorder %s20, 1
      %p85 = scmp.ne.s32.totalorder %s80, %s82
      %p86 = scmp.eq.s32.totalorder %s20, 0
      %p87 = por %p85, %p86
      %p88 = scmp.ne.s32.totalorder %s80, %s82
      %p89 = scmp.eq.s32.totalorder %s25, 1
      %p90 = por %p88, %p89
      %p91 = scmp.ne.s32.totalorder %s82, %s83
      %p92 = scmp.eq.s32.totalorder %s25, 0
      %p93 = por %p91, %p92
      %p94 = scmp.ne.s32.totalorder %s82, %s83
      %p95 = scmp.eq.s32.totalorder %s26, 1
      %p96 = por %p94, %p95
      %p98 = scmp.ne.s32.totalorder %s83, %s97
      %p99 = scmp.eq.s32.totalorder %s26, 0
      %p100 = por %p98, %p99
      %s102 = sadd.s32 %s101, 1
      %p105 = scmp.eq.s32.totalorder %s20, 1
      %p106 = scmp.ne.s32.totalorder %s101, %s103
      %p107 = scmp.eq.s32.totalorder %s20, 0
      %p108 = por %p106, %p107
      %p109 = scmp.ne.s32.totalorder %s101, %s103
      %p110 = scmp.eq.s32.totalorder %s25, 1
      %p111 = por %p109, %p110
      %p112 = scmp.ne.s32.totalorder %s103, %s104
      %p113 = scmp.eq.s32.totalorder %s25, 0
      %p114 = por %p112, %p113
      %p115 = scmp.ne.s32.totalorder %s103, %s104
      %p116 = scmp.eq.s32.totalorder %s26, 1
      %p117 = por %p115, %p116
      %p119 = scmp.ne.s32.totalorder %s104, %s118
      %p120 = scmp.eq.s32.totalorder %s26, 0
      %p121 = por %p119, %p120
      %s123 = sadd.s32 %s122, 1
      %p126 = scmp.eq.s32.totalorder %s20, 1
      %p127 = scmp.ne.s32.totalorder %s122, %s124
      %p128 = scmp.eq.s32.totalorder %s20, 0
      %p129 = por %p127, %p128
      %p130 = scmp.ne.s32.totalorder %s122, %s124
      %p131 = scmp.eq.s32.totalorder %s25, 1
      %p132 = por %p130, %p131
      %p133 = scmp.ne.s32.totalorder %s124, %s125
      %p134 = scmp.eq.s32.totalorder %s25, 0
      %p135 = por %p133, %p134
      %p136 = scmp.ne.s32.totalorder %s124, %s125
      %p137 = scmp.eq.s32.totalorder %s26, 1
      %p138 = por %p136, %p137
      %p140 = scmp.ne.s32.totalorder %s125, %s139
      %p141 = scmp.eq.s32.totalorder %s26, 0
      %p142 = por %p140, %p141
      %s144 = sadd.s32 %s143, 1
      %p147 = scmp.eq.s32.totalorder %s20, 1
      %p148 = scmp.ne.s32.totalorder %s143, %s145
      %p149 = scmp.eq.s32.totalorder %s20, 0
      %p150 = por %p148, %p149
      %p151 = scmp.ne.s32.totalorder %s143, %s145
      %p152 = scmp.eq.s32.totalorder %s25, 1
      %p153 = por %p151, %p152
      %p154 = scmp.ne.s32.totalorder %s145, %s146
      %p155 = scmp.eq.s32.totalorder %s25, 0
      %p156 = por %p154, %p155
      %p157 = scmp.ne.s32.totalorder %s145, %s146
      %p158 = scmp.eq.s32.totalorder %s26, 1
      %p159 = por %p157, %p158
      %p161 = scmp.ne.s32.totalorder %s146, %s160
      %p162 = scmp.eq.s32.totalorder %s26, 0
      %p163 = por %p161, %p162
      %s165 = sadd.s32 %s164, 1
      %p168 = scmp.eq.s32.totalorder %s20, 1
      %p169 = scmp.ne.s32.totalorder %s164, %s166
      %p170 = scmp.eq.s32.totalorder %s20, 0
      %p171 = por %p169, %p170
      %p172 = scmp.ne.s32.totalorder %s164, %s166
      %p173 = scmp.eq.s32.totalorder %s25, 1
      %p174 = por %p172, %p173
      %p175 = scmp.ne.s32.totalorder %s166, %s167
      %p176 = scmp.eq.s32.totalorder %s25, 0
      %p177 = por %p175, %p176
      %p178 = scmp.ne.s32.totalorder %s166, %s167
      %p179 = scmp.eq.s32.totalorder %s26, 1
      %p180 = por %p178, %p179
      %p182 = scmp.ne.s32.totalorder %s167, %s181
      %p183 = scmp.eq.s32.totalorder %s26, 0
      %p184 = por %p182, %p183
      %s186 = sadd.s32 %s185, 1
      %p189 = scmp.eq.s32.totalorder %s20, 1
      %p190 = scmp.ne.s32.totalorder %s185, %s187
      %p191 = scmp.eq.s32.totalorder %s20, 0
      %p192 = por %p190, %p191
      %p193 = scmp.ne.s32.totalorder %s185, %s187
      %p194 = scmp.eq.s32.totalorder %s25, 1
      %p195 = por %p193, %p194
      %p196 = scmp.ne.s32.totalorder %s187, %s188
      %p197 = scmp.eq.s32.totalorder %s25, 0
      %p198 = por %p196, %p197
      %p199 = scmp.ne.s32.totalorder %s187, %s188
      %p200 = scmp.eq.s32.totalorder %s26, 1
      %p201 = por %p199, %p200
      %p203 = scmp.ne.s32.totalorder %s188, %s202
      %p204 = scmp.eq.s32.totalorder %s26, 0
      %p205 = por %p203, %p204
      %s207 = sadd.s32 %s206, 1
      %p210 = scmp.eq.s32.totalorder %s20, 1
      %p211 = scmp.ne.s32.totalorder %s206, %s208
      %p212 = scmp.eq.s32.totalorder %s20, 0
      %p213 = por %p211, %p212
      %p214 = scmp.ne.s32.totalorder %s206, %s208
      %p215 = scmp.eq.s32.totalorder %s25, 1
      %p216 = por %p214, %p215
      %p217 = scmp.ne.s32.totalorder %s208, %s209
      %p218 = scmp.eq.s32.totalorder %s25, 0
      %p219 = por %p217, %p218
      %p220 = scmp.ne.s32.totalorder %s208, %s209
      %p221 = scmp.eq.s32.totalorder %s26, 1
      %p222 = por %p220, %p221
      %p224 = scmp.ne.s32.totalorder %s209, %s223
      %p225 = scmp.eq.s32.totalorder %s26, 0
      %p226 = por %p224, %p225
      %s228 = sadd.s32 %s227, 1
      %p231 = scmp.eq.s32.totalorder %s20, 1
      %p232 = scmp.ne.s32.totalorder %s227, %s229
      %p233 = scmp.eq.s32.totalorder %s20, 0
      %p234 = por %p232, %p233
      %p235 = scmp.ne.s32.totalorder %s227, %s229
      %p236 = scmp.eq.s32.totalorder %s25, 1
      %p237 = por %p235, %p236
      %p238 = scmp.ne.s32.totalorder %s229, %s230
      %p239 = scmp.eq.s32.totalorder %s25, 0
      %p240 = por %p238, %p239
      %p241 = scmp.ne.s32.totalorder %s229, %s230
      %p242 = scmp.eq.s32.totalorder %s26, 1
      %p243 = por %p241, %p242
      %p245 = scmp.ne.s32.totalorder %s230, %s244
      %p246 = scmp.eq.s32.totalorder %s26, 0
      %p247 = por %p245, %p246
      %s249 = sadd.s32 %s248, 1
      %p252 = scmp.eq.s32.totalorder %s20, 1
      %p253 = scmp.ne.s32.totalorder %s248, %s250
      %p254 = scmp.eq.s32.totalorder %s20, 0
      %p255 = por %p253, %p254
      %p256 = scmp.ne.s32.totalorder %s248, %s250
      %p257 = scmp.eq.s32.totalorder %s25, 1
      %p258 = por %p256, %p257
      %p259 = scmp.ne.s32.totalorder %s250, %s251
      %p260 = scmp.eq.s32.totalorder %s25, 0
      %p261 = por %p259, %p260
      %p262 = scmp.ne.s32.totalorder %s250, %s251
      %p263 = scmp.eq.s32.totalorder %s26, 1
      %p264 = por %p262, %p263
      %p266 = scmp.ne.s32.totalorder %s251, %s265
      %p267 = scmp.eq.s32.totalorder %s26, 0
      %p268 = por %p266, %p267
      %s269 = ssub.s32 %s20, %s27
      %p270 = scmp.eq.s32.totalorder %s269, 0
      %s272 = sadd.s32 %s271, 1
      %s273 = scalar_select %p270, %s271, %s272
      %p276 = pneg %p270
      %p277 = scmp.eq.s32.totalorder %s20, 1
      %p278 = por %p276, %p277
      %p279 = scmp.ne.s32.totalorder %s271, %s274
      %p280 = scmp.eq.s32.totalorder %s20, 0
      %p281 = por %p279, %p280
      %p282 = scmp.ne.s32.totalorder %s271, %s274
      %p283 = scmp.eq.s32.totalorder %s25, 1
      %p284 = por %p282, %p283
      %p285 = scmp.ne.s32.totalorder %s274, %s275
      %p286 = scmp.eq.s32.totalorder %s25, 0
      %p287 = por %p285, %p286
      %p288 = scmp.ne.s32.totalorder %s274, %s275
      %p289 = scmp.eq.s32.totalorder %s26, 1
      %p290 = por %p288, %p289
      %p292 = scmp.ne.s32.totalorder %s275, %s291
      %p293 = scmp.eq.s32.totalorder %s26, 0
      %p294 = por %p292, %p293
      %p295 = scmp.le.s32.totalorder 1, %s20
      %p296 = scmp.lt.s32.totalorder %s20, 3
      %p297 = pnand %p295, %p296
      %p298 = pneg %p297
      // Predicated region
      $region9: #{tpu_custom_call.1} parent=5 // pred_check
        _
      $region10: #{tpu_custom_call.1} parent=5 // pred_check_branch
        %300 = sbr.rel (%p297) target = $region12
      $region11: #{tpu_custom_call.1} parent=5 // pred_region
        %s301 = ssub.s32 %s20, 1
        // Predicated region
        $region13: #{tpu_custom_call.1} parent=11 // pred_check
          %p302 = pneg %p93
        $region14: #{tpu_custom_call.1} parent=11 // pred_check_branch
          %304 = sbr.rel (%p302) target = $region16
        $region15: #{tpu_custom_call.1} parent=11 // pred_region
          _
        $region16: #{tpu_custom_call.1} parent=11 // pred_fallthru
          _
        // Predicated region
        $region17: #{tpu_custom_call.1} parent=11 // pred_check
          %p305 = pneg %p114
        $region18: #{tpu_custom_call.1} parent=11 // pred_check_branch
          %307 = sbr.rel (%p305) target = $region20
        $region19: #{tpu_custom_call.1} parent=11 // pred_region
          _
        $region20: #{tpu_custom_call.1} parent=11 // pred_fallthru
          _
        // Predicated region
        $region21: #{tpu_custom_call.1} parent=11 // pred_check
          %p308 = pneg %p135
        $region22: #{tpu_custom_call.1} parent=11 // pred_check_branch
          %310 = sbr.rel (%p308) target = $region24
        $region23: #{tpu_custom_call.1} parent=11 // pred_region
          _
        $region24: #{tpu_custom_call.1} parent=11 // pred_fallthru
          _
        // Predicated region
        $region25: #{tpu_custom_call.1} parent=11 // pred_check
          %p311 = pneg %p156
        $region26: #{tpu_custom_call.1} parent=11 // pred_check_branch
          %313 = sbr.rel (%p311) target = $region28
        $region27: #{tpu_custom_call.1} parent=11 // pred_region
          _
        $region28: #{tpu_custom_call.1} parent=11 // pred_fallthru
          _
        // Predicated region
        $region29: #{tpu_custom_call.1} parent=11 // pred_check
          %p314 = pneg %p177
        $region30: #{tpu_custom_call.1} parent=11 // pred_check_branch
          %316 = sbr.rel (%p314) target = $region32
        $region31: #{tpu_custom_call.1} parent=11 // pred_region
          _
        $region32: #{tpu_custom_call.1} parent=11 // pred_fallthru
          _
        // Predicated region
        $region33: #{tpu_custom_call.1} parent=11 // pred_check
          %p317 = pneg %p198
        $region34: #{tpu_custom_call.1} parent=11 // pred_check_branch
          %319 = sbr.rel (%p317) target = $region36
        $region35: #{tpu_custom_call.1} parent=11 // pred_region
          _
        $region36: #{tpu_custom_call.1} parent=11 // pred_fallthru
          _
        // Predicated region
        $region37: #{tpu_custom_call.1} parent=11 // pred_check
          %p320 = pneg %p219
        $region38: #{tpu_custom_call.1} parent=11 // pred_check_branch
          %322 = sbr.rel (%p320) target = $region40
        $region39: #{tpu_custom_call.1} parent=11 // pred_region
          _
        $region40: #{tpu_custom_call.1} parent=11 // pred_fallthru
          _
        // Predicated region
        $region41: #{tpu_custom_call.1} parent=11 // pred_check
          %p323 = pneg %p240
        $region42: #{tpu_custom_call.1} parent=11 // pred_check_branch
          %325 = sbr.rel (%p323) target = $region44
        $region43: #{tpu_custom_call.1} parent=11 // pred_region
          _
        $region44: #{tpu_custom_call.1} parent=11 // pred_fallthru
          _
        // Predicated region
        $region45: #{tpu_custom_call.1} parent=11 // pred_check
          %p326 = pneg %p261
        $region46: #{tpu_custom_call.1} parent=11 // pred_check_branch
          %328 = sbr.rel (%p326) target = $region48
        $region47: #{tpu_custom_call.1} parent=11 // pred_region
          _
        $region48: #{tpu_custom_call.1} parent=11 // pred_fallthru
          _
      $region12: #{tpu_custom_call.1} parent=5 // pred_fallthru
        _
      %p329 = scmp.lt.s32.totalorder %s20, 2
      // Predicated region
      $region49: #{tpu_custom_call.1} parent=5 // pred_check
        %p330 = pneg %p329
      $region50: #{tpu_custom_call.1} parent=5 // pred_check_branch
        %332 = sbr.rel (%p330) target = $region52
      $region51: #{tpu_custom_call.1} parent=5 // pred_region
        // Predicated region
        $region53: #{tpu_custom_call.1} parent=51 // pred_check
          %p333 = pneg %p40
        $region54: #{tpu_custom_call.1} parent=51 // pred_check_branch
          %335 = sbr.rel (%p333) target = $region56
        $region55: #{tpu_custom_call.1} parent=51 // pred_region
          %p336 = scmp.lt.s32.totalorder %s20, 1
          %s337 = scalar_select %p336, %s20, 1
          %s338 = scalar_lea.vmem %s0, %s337
        $region56: #{tpu_custom_call.1} parent=51 // pred_fallthru
          _
        // Predicated region
        $region57: #{tpu_custom_call.1} parent=51 // pred_check
          %p339 = pneg %p66
        $region58: #{tpu_custom_call.1} parent=51 // pred_check_branch
          %341 = sbr.rel (%p339) target = $region60
        $region59: #{tpu_custom_call.1} parent=51 // pred_region
          %p342 = scmp.lt.s32.totalorder %s20, 1
          %s343 = scalar_select %p342, %s20, 1
          %s344 = smul.addr %s343, 2
          %s345 = smul.addr %s344, 4
          %s346 = scalar_lea.vmem %s1, %s345
        $region60: #{tpu_custom_call.1} parent=51 // pred_fallthru
          _
      $region52: #{tpu_custom_call.1} parent=5 // pred_fallthru
        _
      %p347 = scmp.le.s32.totalorder 1, %s20
      %p348 = scmp.lt.s32.totalorder %s20, 3
      %p349 = pnand %p347, %p348
      %p350 = pneg %p349
      // Predicated region
      $region61: #{tpu_custom_call.1} parent=5 // pred_check
        _
      $region62: #{tpu_custom_call.1} parent=5 // pred_check_branch
        %352 = sbr.rel (%p349) target = $region64
      $region63: #{tpu_custom_call.1} parent=5 // pred_region
        %s353 = ssub.s32 %s20, 1
        %p354 = scmp.lt.s32.totalorder %s25, 1
        %s355 = scalar_select %p354, %s25, 1
        %s356 = scalar_lea.vmem %s0, %s355
        %p357 = pneg %p46
        %p358 = pneg %p43
        %p359 = scmp.lt.s32.totalorder %s25, 1
        %s360 = scalar_select %p359, %s25, 1
        %s361 = smul.addr %s360, 2
        %s362 = smul.addr %s361, 4
        %s363 = scalar_lea.vmem %s1, %s362
        %p364 = pneg %p72
        %p365 = pneg %p69
        %p366 = pneg %p93
        %p367 = pneg %p90
        %p368 = pneg %p114
        %p369 = pneg %p111
        %p370 = pneg %p135
        %p371 = pneg %p132
        %p372 = pneg %p156
        %p373 = pneg %p153
        %p374 = pneg %p177
        %p375 = pneg %p174
        %p376 = pneg %p198
        %p377 = pneg %p195
        %p378 = pneg %p219
        %p379 = pneg %p216
        %p380 = pneg %p240
        %p381 = pneg %p237
        %p382 = pneg %p261
        %p383 = pneg %p258
        %p384 = pneg %p287
        %p385 = pneg %p284
        %s386 = sand.u32 %s274, 1
        %s387 = scalar_lea.sflag [#allocation3], %s386
        %s388 = sand.u32 %s274, 1
        %s389 = scalar_lea.vmem [#allocation2], %s388
        %p390 = scmp.lt.s32.totalorder %s25, 1
        %s391 = scalar_select %p390, %s25, 1
        %s392 = scalar_lea.vmem %s0, %s391
        %p393 = scmp.lt.s32.totalorder %s25, 1
        %s394 = scalar_select %p393, %s25, 1
        %s395 = smul.addr %s394, 2
        %s396 = smul.addr %s395, 4
        %s397 = scalar_lea.vmem %s1, %s396
        %v398 = vld [vmem:[%s392] sm:$0x1]
        %v399 = vld [vmem:[%s2] sm:$0xff]
        %v400 = vld [vmem:[%s2 + $0x8] sm:$0xff]
        %v401 = vld [vmem:[%s2 + $0x10] sm:$0xff]
        %v402 = vld [vmem:[%s2 + $0x18] sm:$0xff]
        %v403 = vld [vmem:[%s3] sm:$0x1]
        %vm404 = vcmask 261120
        %v406 = vsel %vm404, %v398, 0
        %408 = vmatprep.subr.mxu0 0.0
        %409 = vmatpush1.msra.mxu0 %v399
        %410 = vmatprep.subr.mxu0 0.0
        %411 = vmatpush1.msra.mxu0 %v400
        %412 = vmatprep.subr.mxu0 0.0
        %413 = vmatpush1.msra.mxu0 %v401
        %414 = vmatprep.subr.mxu0 0.0
        %415 = vmatpush1.msra.mxu0 %v402
        %416 = vmatprep.subr.mxu0 0.0
        %417 = vmatpush1.msra.mxu0 0.0
        %418 = vmatprep.subr.mxu0 0.0
        %419 = vmatpush1.msra.mxu0 0.0
        %420 = vmatprep.subr.mxu0 0.0
        %421 = vmatpush1.msra.mxu0 0.0
        %422 = vmatprep.subr.mxu0 0.0
        %423 = vmatpush1.msra.mxu0 0.0
        %424 = vmatprep.subr.mxu0 0.0
        %425 = vmatpush1.msra.mxu0 0.0
        %426 = vmatprep.subr.mxu0 0.0
        %427 = vmatpush1.msra.mxu0 0.0
        %428 = vmatprep.subr.mxu0 0.0
        %429 = vmatpush1.msra.mxu0 0.0
        %430 = vmatprep.subr.mxu0 0.0
        %431 = vmatpush1.msra.mxu0 0.0
        %432 = vmatprep.subr.mxu0 0.0
        %433 = vmatpush1.msra.mxu0 0.0
        %434 = vmatprep.subr.mxu0 0.0
        %435 = vmatpush1.msra.mxu0 0.0
        %436 = vmatprep.subr.mxu0 0.0
        %437 = vmatpush1.msra.mxu0 0.0
        %438 = vmatprep.subr.mxu0 0.0
        %439 = vmatpush1.msra.mxu0 0.0
        %440 = vmatprep.subr.mxu0 0.0
        %441 = vmatpush1.msra.mxu0 0.0
        %442 = vmatprep.subr.mxu0 0.0
        %443 = vmatpush1.msra.mxu0 0.0
        %444 = vmatprep.subr.mxu0 0.0
        %445 = vmatpush1.msra.mxu0 0.0
        %446 = vmatprep.subr.mxu0 0.0
        %447 = vmatpush1.msra.mxu0 0.0
        %448 = vmatprep.subr.mxu0 0.0
        %449 = vmatpush1.msra.mxu0 0.0
        %450 = vmatprep.subr.mxu0 0.0
        %451 = vmatpush1.msra.mxu0 0.0
        %452 = vmatprep.subr.mxu0 0.0
        %453 = vmatpush1.msra.mxu0 0.0
        %454 = vmatprep.subr.mxu0 0.0
        %455 = vmatpush1.msra.mxu0 0.0
        %456 = vmatprep.subr.mxu0 0.0
        %457 = vmatpush1.msra.mxu0 0.0
        %458 = vmatprep.subr.mxu0 0.0
        %459 = vmatpush1.msra.mxu0 0.0
        %460 = vmatprep.subr.mxu0 0.0
        %461 = vmatpush1.msra.mxu0 0.0
        %462 = vmatprep.subr.mxu0 0.0
        %463 = vmatpush1.msra.mxu0 0.0
        %464 = vmatprep.subr.mxu0 0.0
        %465 = vmatpush1.msra.mxu0 0.0
        %466 = vmatprep.subr.mxu0 0.0
        %467 = vmatpush1.msra.mxu0 0.0
        %468 = vmatprep.subr.mxu0 0.0
        %469 = vmatpush1.msra.mxu0 0.0
        %470 = vmatprep.subr.mxu0 0.0
        %471 = vmatpush1.msra.mxu0 0.0
        %472 = vmatprep.mubr.f32.mxu0 0.0
        %473 = vmatmul.mubr.f32.gmra.mrb[0].mxu0 %v406
        %v474 = vpop.f32.mrb[0].mxu0
        %v475 = vadd.f32 %v403, %v474
        %v476 = vpop.f32.mrb[0].mxu0
        %477 = vdwg.mxu0
        %v478 = vmax.f32 %v475, 0.0
        %v479 = vld [vmem:[%s4] sm:$0xff]
        %v480 = vld [vmem:[%s4 + $0x8] sm:$0xff]
        %v481 = vld [vmem:[%s4 + $0x10] sm:$0xff]
        %v482 = vld [vmem:[%s4 + $0x18] sm:$0xff]
        %v484 = vsel %vm404, %v478, 0
        %486 = vmatprep.subr.mxu0 0.0
        %487 = vmatpush1.msra.mxu0 %v479
        %488 = vmatprep.subr.mxu0 0.0
        %489 = vmatpush1.msra.mxu0 %v480
        %490 = vmatprep.subr.mxu0 0.0
        %491 = vmatpush1.msra.mxu0 %v481
        %492 = vmatprep.subr.mxu0 0.0
        %493 = vmatpush1.msra.mxu0 %v482
        %494 = vmatprep.subr.mxu0 0.0
        %495 = vmatpush1.msra.mxu0 0.0
        %496 = vmatprep.subr.mxu0 0.0
        %497 = vmatpush1.msra.mxu0 0.0
        %498 = vmatprep.subr.mxu0 0.0
        %499 = vmatpush1.msra.mxu0 0.0
        %500 = vmatprep.subr.mxu0 0.0
        %501 = vmatpush1.msra.mxu0 0.0
        %502 = vmatprep.subr.mxu0 0.0
        %503 = vmatpush1.msra.mxu0 0.0
        %504 = vmatprep.subr.mxu0 0.0
        %505 = vmatpush1.msra.mxu0 0.0
        %506 = vmatprep.subr.mxu0 0.0
        %507 = vmatpush1.msra.mxu0 0.0
        %508 = vmatprep.subr.mxu0 0.0
        %509 = vmatpush1.msra.mxu0 0.0
        %510 = vmatprep.subr.mxu0 0.0
        %511 = vmatpush1.msra.mxu0 0.0
        %512 = vmatprep.subr.mxu0 0.0
        %513 = vmatpush1.msra.mxu0 0.0
        %514 = vmatprep.subr.mxu0 0.0
        %515 = vmatpush1.msra.mxu0 0.0
        %516 = vmatprep.subr.mxu0 0.0
        %517 = vmatpush1.msra.mxu0 0.0
        %518 = vmatprep.subr.mxu0 0.0
        %519 = vmatpush1.msra.mxu0 0.0
        %520 = vmatprep.subr.mxu0 0.0
        %521 = vmatpush1.msra.mxu0 0.0
        %522 = vmatprep.subr.mxu0 0.0
        %523 = vmatpush1.msra.mxu0 0.0
        %524 = vmatprep.subr.mxu0 0.0
        %525 = vmatpush1.msra.mxu0 0.0
        %526 = vmatprep.subr.mxu0 0.0
        %527 = vmatpush1.msra.mxu0 0.0
        %528 = vmatprep.subr.mxu0 0.0
        %529 = vmatpush1.msra.mxu0 0.0
        %530 = vmatprep.subr.mxu0 0.0
        %531 = vmatpush1.msra.mxu0 0.0
        %532 = vmatprep.subr.mxu0 0.0
        %533 = vmatpush1.msra.mxu0 0.0
        %534 = vmatprep.subr.mxu0 0.0
        %535 = vmatpush1.msra.mxu0 0.0
        %536 = vmatprep.subr.mxu0 0.0
        %537 = vmatpush1.msra.mxu0 0.0
        %538 = vmatprep.subr.mxu0 0.0
        %539 = vmatpush1.msra.mxu0 0.0
        %540 = vmatprep.subr.mxu0 0.0
        %541 = vmatpush1.msra.mxu0 0.0
        %542 = vmatprep.subr.mxu0 0.0
        %543 = vmatpush1.msra.mxu0 0.0
        %544 = vmatprep.subr.mxu0 0.0
        %545 = vmatpush1.msra.mxu0 0.0
        %546 = vmatprep.subr.mxu0 0.0
        %547 = vmatpush1.msra.mxu0 0.0
        %548 = vmatprep.subr.mxu0 0.0
        %549 = vmatpush1.msra.mxu0 0.0
        %550 = vmatprep.mubr.f32.mxu0 0.0
        %551 = vmatmul.mubr.f32.gmra.mrb[0].mxu0 %v484
        %v552 = vpop.f32.mrb[0].mxu0
        %v553 = vadd.f32 0.0, %v552
        %v554 = vpop.f32.mrb[0].mxu0
        %555 = vdwg.mxu0
        %v556 = vld [vmem:[%s5] sm:$0xff]
        %v557 = vld [vmem:[%s5 + $0x8] sm:$0xff]
        %v558 = vld [vmem:[%s5 + $0x10] sm:$0xff]
        %v559 = vld [vmem:[%s5 + $0x18] sm:$0xff]
        %560 = vrot.lane.b32.xlu0 %v478, 96
        %v561 = vpop.permute.xlu0 %560
        %v562 = vsel %vm404, %v561, 0
        %564 = vmatprep.subr.mxu0 0.0
        %565 = vmatpush1.msra.mxu0 %v556
        %566 = vmatprep.subr.mxu0 0.0
        %567 = vmatpush1.msra.mxu0 %v557
        %568 = vmatprep.subr.mxu0 0.0
        %569 = vmatpush1.msra.mxu0 %v558
        %570 = vmatprep.subr.mxu0 0.0
        %571 = vmatpush1.msra.mxu0 %v559
        %572 = vmatprep.subr.mxu0 0.0
        %573 = vmatpush1.msra.mxu0 0.0
        %574 = vmatprep.subr.mxu0 0.0
        %575 = vmatpush1.msra.mxu0 0.0
        %576 = vmatprep.subr.mxu0 0.0
        %577 = vmatpush1.msra.mxu0 0.0
        %578 = vmatprep.subr.mxu0 0.0
        %579 = vmatpush1.msra.mxu0 0.0
        %580 = vmatprep.subr.mxu0 0.0
        %581 = vmatpush1.msra.mxu0 0.0
        %582 = vmatprep.subr.mxu0 0.0
        %583 = vmatpush1.msra.mxu0 0.0
        %584 = vmatprep.subr.mxu0 0.0
        %585 = vmatpush1.msra.mxu0 0.0
        %586 = vmatprep.subr.mxu0 0.0
        %587 = vmatpush1.msra.mxu0 0.0
        %588 = vmatprep.subr.mxu0 0.0
        %589 = vmatpush1.msra.mxu0 0.0
        %590 = vmatprep.subr.mxu0 0.0
        %591 = vmatpush1.msra.mxu0 0.0
        %592 = vmatprep.subr.mxu0 0.0
        %593 = vmatpush1.msra.mxu0 0.0
        %594 = vmatprep.subr.mxu0 0.0
        %595 = vmatpush1.msra.mxu0 0.0
        %596 = vmatprep.subr.mxu0 0.0
        %597 = vmatpush1.msra.mxu0 0.0
        %598 = vmatprep.subr.mxu0 0.0
        %599 = vmatpush1.msra.mxu0 0.0
        %600 = vmatprep.subr.mxu0 0.0
        %601 = vmatpush1.msra.mxu0 0.0
        %602 = vmatprep.subr.mxu0 0.0
        %603 = vmatpush1.msra.mxu0 0.0
        %604 = vmatprep.subr.mxu0 0.0
        %605 = vmatpush1.msra.mxu0 0.0
        %606 = vmatprep.subr.mxu0 0.0
        %607 = vmatpush1.msra.mxu0 0.0
        %608 = vmatprep.subr.mxu0 0.0
        %609 = vmatpush1.msra.mxu0 0.0
        %610 = vmatprep.subr.mxu0 0.0
        %611 = vmatpush1.msra.mxu0 0.0
        %612 = vmatprep.subr.mxu0 0.0
        %613 = vmatpush1.msra.mxu0 0.0
        %614 = vmatprep.subr.mxu0 0.0
        %615 = vmatpush1.msra.mxu0 0.0
        %616 = vmatprep.subr.mxu0 0.0
        %617 = vmatpush1.msra.mxu0 0.0
        %618 = vmatprep.subr.mxu0 0.0
        %619 = vmatpush1.msra.mxu0 0.0
        %620 = vmatprep.subr.mxu0 0.0
        %621 = vmatpush1.msra.mxu0 0.0
        %622 = vmatprep.subr.mxu0 0.0
        %623 = vmatpush1.msra.mxu0 0.0
        %624 = vmatprep.subr.mxu0 0.0
        %625 = vmatpush1.msra.mxu0 0.0
        %626 = vmatprep.subr.mxu0 0.0
        %627 = vmatpush1.msra.mxu0 0.0
        %628 = vmatprep.mubr.f32.mxu0 0.0
        %629 = vmatmul.mubr.f32.gmra.mrb[0].mxu0 %v562
        %v630 = vpop.f32.mrb[0].mxu0
        %v631 = vadd.f32 0.0, %v630
        %v632 = vpop.f32.mrb[0].mxu0
        %633 = vdwg.mxu0
        %v634 = vld [vmem:[%s6] sm:$0x1]
        %v635 = vadd.f32 %v634, %v553
        %v636 = vld [vmem:[%s7] sm:$0x1]
        %v637 = vadd.f32 %v636, %v631
        %v638 = vld [vmem:[%s9] sm:$0x1]
        %v639 = vadd.f32 %v638, 1e-05
        %v640 = vrcp.pop %v639
        %v641 = vmul.f32 1.0, %v640
        %v642 = vmul.f32 %v635, %v641
        %v643 = vld [vmem:[%s8] sm:$0x1]
        %v644 = vmul.f32 %v643, %v641
        %v645 = vmul.f32 %v635, %v644
        %v646 = vsub.f32 %v637, %v645
        %v647 = vld [vmem:[%s397] sm:$0xff]
        %v648 = vld [vmem:[%s10] sm:$0xf]
        %v650 = vcombine.high %v647, %v647
        %652 = vxpose.xlu0.b32.start [1/16] %v647, 128
        %653 = vxpose.xlu0.b32.cont [2/16] 0.0, 128
        %654 = vxpose.xlu0.b32.cont [3/16] 0.0, 128
        %655 = vxpose.xlu0.b32.cont [4/16] 0.0, 128
        %656 = vxpose.xlu0.b32.cont [5/16] 0.0, 128
        %657 = vxpose.xlu0.b32.cont [6/16] 0.0, 128
        %658 = vxpose.xlu0.b32.cont [7/16] 0.0, 128
        %659 = vxpose.xlu0.b32.cont [8/16] 0.0, 128
        %660 = vxpose.xlu0.b32.cont [9/16] 0.0, 128
        %661 = vxpose.xlu0.b32.cont [10/16] 0.0, 128
        %662 = vxpose.xlu0.b32.cont [11/16] 0.0, 128
        %663 = vxpose.xlu0.b32.cont [12/16] 0.0, 128
        %664 = vxpose.xlu0.b32.cont [13/16] 0.0, 128
        %665 = vxpose.xlu0.b32.cont [14/16] 0.0, 128
        %666 = vxpose.xlu0.b32.cont [15/16] 0.0, 128
        %667 = vxpose.xlu0.b32.end [16/16] 0.0, 128
        %v668 = vpop.trf.xlu0
        %v669 = vpop.trf.xlu0
        %v670 = vpop.trf.xlu0
        %v671 = vpop.trf.xlu0
        %v672 = vpop.trf.xlu0
        %v673 = vpop.trf.xlu0
        %v674 = vpop.trf.xlu0
        %v675 = vpop.trf.xlu0
        %v676 = vpop.trf.xlu0
        %v677 = vpop.trf.xlu0
        %v678 = vpop.trf.xlu0
        %v679 = vpop.trf.xlu0
        %v680 = vpop.trf.xlu0
        %v681 = vpop.trf.xlu0
        %v682 = vpop.trf.xlu0
        %v683 = vpop.trf.xlu0
        %684 = vxpose.xlu0.b32.start [1/16] %v650, 128
        %685 = vxpose.xlu0.b32.cont [2/16] 0.0, 128
        %686 = vxpose.xlu0.b32.cont [3/16] 0.0, 128
        %687 = vxpose.xlu0.b32.cont [4/16] 0.0, 128
        %688 = vxpose.xlu0.b32.cont [5/16] 0.0, 128
        %689 = vxpose.xlu0.b32.cont [6/16] 0.0, 128
        %690 = vxpose.xlu0.b32.cont [7/16] 0.0, 128
        %691 = vxpose.xlu0.b32.cont [8/16] 0.0, 128
        %692 = vxpose.xlu0.b32.cont [9/16] 0.0, 128
        %693 = vxpose.xlu0.b32.cont [10/16] 0.0, 128
        %694 = vxpose.xlu0.b32.cont [11/16] 0.0, 128
        %695 = vxpose.xlu0.b32.cont [12/16] 0.0, 128
        %696 = vxpose.xlu0.b32.cont [13/16] 0.0, 128
        %697 = vxpose.xlu0.b32.cont [14/16] 0.0, 128
        %698 = vxpose.xlu0.b32.cont [15/16] 0.0, 128
        %699 = vxpose.xlu0.b32.end [16/16] 0.0, 128
        %v700 = vpop.trf.xlu0
        %v701 = vpop.trf.xlu0
        %v702 = vpop.trf.xlu0
        %v703 = vpop.trf.xlu0
        %v704 = vpop.trf.xlu0
        %v705 = vpop.trf.xlu0
        %v706 = vpop.trf.xlu0
        %v707 = vpop.trf.xlu0
        %v708 = vpop.trf.xlu0
        %v709 = vpop.trf.xlu0
        %v710 = vpop.trf.xlu0
        %v711 = vpop.trf.xlu0
        %v712 = vpop.trf.xlu0
        %v713 = vpop.trf.xlu0
        %v714 = vpop.trf.xlu0
        %v715 = vpop.trf.xlu0
        %vm716 = vcmask 31744
        %v718 = vsel %vm716, %v668, 0
        %v721 = vsel %vm716, %v669, 0
        %v724 = vsel %vm716, %v670, 0
        %v727 = vsel %vm716, %v671, 0
        %v730 = vsel %vm716, %v672, 0
        %v733 = vsel %vm716, %v673, 0
        %v736 = vsel %vm716, %v674, 0
        %v739 = vsel %vm716, %v675, 0
        %v742 = vsel %vm716, %v676, 0
        %v745 = vsel %vm716, %v677, 0
        %v748 = vsel %vm716, %v678, 0
        %v751 = vsel %vm716, %v679, 0
        %v754 = vsel %vm716, %v680, 0
        %v757 = vsel %vm716, %v681, 0
        %v760 = vsel %vm716, %v682, 0
        %v763 = vsel %vm716, %v683, 0
        %v766 = vsel %vm716, %v700, 0
        %v769 = vsel %vm716, %v701, 0
        %v772 = vsel %vm716, %v702, 0
        %v775 = vsel %vm716, %v703, 0
        %v778 = vsel %vm716, %v704, 0
        %v781 = vsel %vm716, %v705, 0
        %v784 = vsel %vm716, %v706, 0
        %v787 = vsel %vm716, %v707, 0
        %v790 = vsel %vm716, %v708, 0
        %v793 = vsel %vm716, %v709, 0
        %v796 = vsel %vm716, %v710, 0
        %v799 = vsel %vm716, %v711, 0
        %v802 = vsel %vm716, %v712, 0
        %v805 = vsel %vm716, %v713, 0
        %v808 = vsel %vm716, %v714, 0
        %v811 = vsel %vm716, %v715, 0
        %vm813 = vcmask 1043456
        %v815 = vsel %vm813, %v648, 0
        %817 = vmatprep.subr.mxu0 0.0
        %818 = vmatpush1.msra.mxu0 %v815
        %819 = vmatprep.subr.mxu0 0.0
        %820 = vmatpush1.msra.mxu0 0.0
        %821 = vmatprep.subr.mxu0 0.0
        %822 = vmatpush1.msra.mxu0 0.0
        %823 = vmatprep.subr.mxu0 0.0
        %824 = vmatpush1.msra.mxu0 0.0
        %825 = vmatprep.subr.mxu0 0.0
        %826 = vmatpush1.msra.mxu0 0.0
        %827 = vmatprep.subr.mxu0 0.0
        %828 = vmatpush1.msra.mxu0 0.0
        %829 = vmatprep.subr.mxu0 0.0
        %830 = vmatpush1.msra.mxu0 0.0
        %831 = vmatprep.subr.mxu0 0.0
        %832 = vmatpush1.msra.mxu0 0.0
        %833 = vmatprep.subr.mxu0 0.0
        %834 = vmatpush1.msra.mxu0 0.0
        %835 = vmatprep.subr.mxu0 0.0
        %836 = vmatpush1.msra.mxu0 0.0
        %837 = vmatprep.subr.mxu0 0.0
        %838 = vmatpush1.msra.mxu0 0.0
        %839 = vmatprep.subr.mxu0 0.0
        %840 = vmatpush1.msra.mxu0 0.0
        %841 = vmatprep.subr.mxu0 0.0
        %842 = vmatpush1.msra.mxu0 0.0
        %843 = vmatprep.subr.mxu0 0.0
        %844 = vmatpush1.msra.mxu0 0.0
        %845 = vmatprep.subr.mxu0 0.0
        %846 = vmatpush1.msra.mxu0 0.0
        %847 = vmatprep.subr.mxu0 0.0
        %848 = vmatpush1.msra.mxu0 0.0
        %849 = vmatprep.subr.mxu0 0.0
        %850 = vmatpush1.msra.mxu0 0.0
        %851 = vmatprep.subr.mxu0 0.0
        %852 = vmatpush1.msra.mxu0 0.0
        %853 = vmatprep.subr.mxu0 0.0
        %854 = vmatpush1.msra.mxu0 0.0
        %855 = vmatprep.subr.mxu0 0.0
        %856 = vmatpush1.msra.mxu0 0.0
        %857 = vmatprep.subr.mxu0 0.0
        %858 = vmatpush1.msra.mxu0 0.0
        %859 = vmatprep.subr.mxu0 0.0
        %860 = vmatpush1.msra.mxu0 0.0
        %861 = vmatprep.subr.mxu0 0.0
        %862 = vmatpush1.msra.mxu0 0.0
        %863 = vmatprep.subr.mxu0 0.0
        %864 = vmatpush1.msra.mxu0 0.0
        %865 = vmatprep.subr.mxu0 0.0
        %866 = vmatpush1.msra.mxu0 0.0
        %867 = vmatprep.subr.mxu0 0.0
        %868 = vmatpush1.msra.mxu0 0.0
        %869 = vmatprep.subr.mxu0 0.0
        %870 = vmatpush1.msra.mxu0 0.0
        %871 = vmatprep.subr.mxu0 0.0
        %872 = vmatpush1.msra.mxu0 0.0
        %873 = vmatprep.subr.mxu0 0.0
        %874 = vmatpush1.msra.mxu0 0.0
        %875 = vmatprep.subr.mxu0 0.0
        %876 = vmatpush1.msra.mxu0 0.0
        %877 = vmatprep.subr.mxu0 0.0
        %878 = vmatpush1.msra.mxu0 0.0
        %879 = vmatprep.subr.mxu0 0.0
        %880 = vmatpush1.msra.mxu0 0.0
        %881 = vmatprep.mubr.f32.mxu0 0.0
        %882 = vmatmul.mubr.f32.gmra.mrb[0].mxu0 %v718
        %v883 = vpop.f32.mrb[0].mxu0
        %v884 = vadd.f32 0.0, %v883
        %v885 = vpop.f32.mrb[0].mxu0
        %886 = vmatprep.mubr.f32.mxu0 0.0
        %887 = vmatmul.mubr.f32.gmra.mrb[0].mxu0 %v721
        %v888 = vpop.f32.mrb[0].mxu0
        %v889 = vadd.f32 0.0, %v888
        %v890 = vpop.f32.mrb[0].mxu0
        %891 = vmatprep.mubr.f32.mxu0 0.0
        %892 = vmatmul.mubr.f32.gmra.mrb[0].mxu0 %v724
        %v893 = vpop.f32.mrb[0].mxu0
        %v894 = vadd.f32 0.0, %v893
        %v895 = vpop.f32.mrb[0].mxu0
        %896 = vmatprep.mubr.f32.mxu0 0.0
        %897 = vmatmul.mubr.f32.gmra.mrb[0].mxu0 %v727
        %v898 = vpop.f32.mrb[0].mxu0
        %v899 = vadd.f32 0.0, %v898
        %v900 = vpop.f32.mrb[0].mxu0
        %901 = vmatprep.mubr.f32.mxu0 0.0
        %902 = vmatmul.mubr.f32.gmra.mrb[0].mxu0 %v730
        %v903 = vpop.f32.mrb[0].mxu0
        %v904 = vadd.f32 0.0, %v903
        %v905 = vpop.f32.mrb[0].mxu0
        %906 = vmatprep.mubr.f32.mxu0 0.0
        %907 = vmatmul.mubr.f32.gmra.mrb[0].mxu0 %v733
        %v908 = vpop.f32.mrb[0].mxu0
        %v909 = vadd.f32 0.0, %v908
        %v910 = vpop.f32.mrb[0].mxu0
        %911 = vmatprep.mubr.f32.mxu0 0.0
        %912 = vmatmul.mubr.f32.gmra.mrb[0].mxu0 %v736
        %v913 = vpop.f32.mrb[0].mxu0
        %v914 = vadd.f32 0.0, %v913
        %v915 = vpop.f32.mrb[0].mxu0
        %916 = vmatprep.mubr.f32.mxu0 0.0
        %917 = vmatmul.mubr.f32.gmra.mrb[0].mxu0 %v739
        %v918 = vpop.f32.mrb[0].mxu0
        %v919 = vadd.f32 0.0, %v918
        %v920 = vpop.f32.mrb[0].mxu0
        %921 = vmatprep.mubr.f32.mxu0 0.0
        %922 = vmatmul.mubr.f32.gmra.mrb[0].mxu0 %v742
        %v923 = vpop.f32.mrb[0].mxu0
        %v924 = vadd.f32 0.0, %v923
        %v925 = vpop.f32.mrb[0].mxu0
        %926 = vmatprep.mubr.f32.mxu0 0.0
        %927 = vmatmul.mubr.f32.gmra.mrb[0].mxu0 %v745
        %v928 = vpop.f32.mrb[0].mxu0
        %v929 = vadd.f32 0.0, %v928
        %v930 = vpop.f32.mrb[0].mxu0
        %931 = vmatprep.mubr.f32.mxu0 0.0
        %932 = vmatmul.mubr.f32.gmra.mrb[0].mxu0 %v748
        %v933 = vpop.f32.mrb[0].mxu0
        %v934 = vadd.f32 0.0, %v933
        %v935 = vpop.f32.mrb[0].mxu0
        %936 = vmatprep.mubr.f32.mxu0 0.0
        %937 = vmatmul.mubr.f32.gmra.mrb[0].mxu0 %v751
        %v938 = vpop.f32.mrb[0].mxu0
        %v939 = vadd.f32 0.0, %v938
        %v940 = vpop.f32.mrb[0].mxu0
        %941 = vmatprep.mubr.f32.mxu0 0.0
        %942 = vmatmul.mubr.f32.gmra.mrb[0].mxu0 %v754
        %v943 = vpop.f32.mrb[0].mxu0
        %v944 = vadd.f32 0.0, %v943
        %v945 = vpop.f32.mrb[0].mxu0
        %946 = vmatprep.mubr.f32.mxu0 0.0
        %947 = vmatmul.mubr.f32.gmra.mrb[0].mxu0 %v757
        %v948 = vpop.f32.mrb[0].mxu0
        %v949 = vadd.f32 0.0, %v948
        %v950 = vpop.f32.mrb[0].mxu0
        %951 = vmatprep.mubr.f32.mxu0 0.0
        %952 = vmatmul.mubr.f32.gmra.mrb[0].mxu0 %v760
        %v953 = vpop.f32.mrb[0].mxu0
        %v954 = vadd.f32 0.0, %v953
        %v955 = vpop.f32.mrb[0].mxu0
        %956 = vmatprep.mubr.f32.mxu0 0.0
        %957 = vmatmul.mubr.f32.gmra.mrb[0].mxu0 %v763
        %v958 = vpop.f32.mrb[0].mxu0
        %v959 = vadd.f32 0.0, %v958
        %v960 = vpop.f32.mrb[0].mxu0
        %961 = vmatprep.mubr.f32.mxu0 0.0
        %962 = vmatmul.mubr.f32.gmra.mrb[0].mxu0 %v766
        %v963 = vpop.f32.mrb[0].mxu0
        %v964 = vadd.f32 0.0, %v963
        %v965 = vpop.f32.mrb[0].mxu0
        %966 = vmatprep.mubr.f32.mxu0 0.0
        %967 = vmatmul.mubr.f32.gmra.mrb[0].mxu0 %v769
        %v968 = vpop.f32.mrb[0].mxu0
        %v969 = vadd.f32 0.0, %v968
        %v970 = vpop.f32.mrb[0].mxu0
        %971 = vmatprep.mubr.f32.mxu0 0.0
        %972 = vmatmul.mubr.f32.gmra.mrb[0].mxu0 %v772
        %v973 = vpop.f32.mrb[0].mxu0
        %v974 = vadd.f32 0.0, %v973
        %v975 = vpop.f32.mrb[0].mxu0
        %976 = vmatprep.mubr.f32.mxu0 0.0
        %977 = vmatmul.mubr.f32.gmra.mrb[0].mxu0 %v775
        %v978 = vpop.f32.mrb[0].mxu0
        %v979 = vadd.f32 0.0, %v978
        %v980 = vpop.f32.mrb[0].mxu0
        %981 = vmatprep.mubr.f32.mxu0 0.0
        %982 = vmatmul.mubr.f32.gmra.mrb[0].mxu0 %v778
        %v983 = vpop.f32.mrb[0].mxu0
        %v984 = vadd.f32 0.0, %v983
        %v985 = vpop.f32.mrb[0].mxu0
        %986 = vmatprep.mubr.f32.mxu0 0.0
        %987 = vmatmul.mubr.f32.gmra.mrb[0].mxu0 %v781
        %v988 = vpop.f32.mrb[0].mxu0
        %v989 = vadd.f32 0.0, %v988
        %v990 = vpop.f32.mrb[0].mxu0
        %991 = vmatprep.mubr.f32.mxu0 0.0
        %992 = vmatmul.mubr.f32.gmra.mrb[0].mxu0 %v784
        %v993 = vpop.f32.mrb[0].mxu0
        %v994 = vadd.f32 0.0, %v993
        %v995 = vpop.f32.mrb[0].mxu0
        %996 = vmatprep.mubr.f32.mxu0 0.0
        %997 = vmatmul.mubr.f32.gmra.mrb[0].mxu0 %v787
        %v998 = vpop.f32.mrb[0].mxu0
        %v999 = vadd.f32 0.0, %v998
        %v1000 = vpop.f32.mrb[0].mxu0
        %1001 = vmatprep.mubr.f32.mxu0 0.0
        %1002 = vmatmul.mubr.f32.gmra.mrb[0].mxu0 %v790
        %v1003 = vpop.f32.mrb[0].mxu0
        %v1004 = vadd.f32 0.0, %v1003
        %v1005 = vpop.f32.mrb[0].mxu0
        %1006 = vmatprep.mubr.f32.mxu0 0.0
        %1007 = vmatmul.mubr.f32.gmra.mrb[0].mxu0 %v793
        %v1008 = vpop.f32.mrb[0].mxu0
        %v1009 = vadd.f32 0.0, %v1008
        %v1010 = vpop.f32.mrb[0].mxu0
        %1011 = vmatprep.mubr.f32.mxu0 0.0
        %1012 = vmatmul.mubr.f32.gmra.mrb[0].mxu0 %v796
        %v1013 = vpop.f32.mrb[0].mxu0
        %v1014 = vadd.f32 0.0, %v1013
        %v1015 = vpop.f32.mrb[0].mxu0
        %1016 = vmatprep.mubr.f32.mxu0 0.0
        %1017 = vmatmul.mubr.f32.gmra.mrb[0].mxu0 %v799
        %v1018 = vpop.f32.mrb[0].mxu0
        %v1019 = vadd.f32 0.0, %v1018
        %v1020 = vpop.f32.mrb[0].mxu0
        %1021 = vmatprep.mubr.f32.mxu0 0.0
        %1022 = vmatmul.mubr.f32.gmra.mrb[0].mxu0 %v802
        %v1023 = vpop.f32.mrb[0].mxu0
        %v1024 = vadd.f32 0.0, %v1023
        %v1025 = vpop.f32.mrb[0].mxu0
        %1026 = vmatprep.mubr.f32.mxu0 0.0
        %1027 = vmatmul.mubr.f32.gmra.mrb[0].mxu0 %v805
        %v1028 = vpop.f32.mrb[0].mxu0
        %v1029 = vadd.f32 0.0, %v1028
        %v1030 = vpop.f32.mrb[0].mxu0
        %1031 = vmatprep.mubr.f32.mxu0 0.0
        %1032 = vmatmul.mubr.f32.gmra.mrb[0].mxu0 %v808
        %v1033 = vpop.f32.mrb[0].mxu0
        %v1034 = vadd.f32 0.0, %v1033
        %v1035 = vpop.f32.mrb[0].mxu0
        %1036 = vmatprep.mubr.f32.mxu0 0.0
        %1037 = vmatmul.mubr.f32.gmra.mrb[0].mxu0 %v811
        %v1038 = vpop.f32.mrb[0].mxu0
        %v1039 = vadd.f32 0.0, %v1038
        %v1040 = vpop.f32.mrb[0].mxu0
        %1041 = vdwg.mxu0
        %v1043 = vlaneseq
        %v1044 = vshrl.u32 %v1043, 7
        %v1045 = vsub.s32 0, %v1044
        %v1046 = vrot.slane %v642, %v1045
        %v1048 = vmul.f32 %v884, %v1046
        %v1049 = vmul.f32 %v889, %v1046
        %v1050 = vmul.f32 %v894, %v1046
        %v1051 = vmul.f32 %v899, %v1046
        %v1052 = vmul.f32 %v904, %v1046
        %v1053 = vmul.f32 %v909, %v1046
        %v1054 = vmul.f32 %v914, %v1046
        %v1055 = vmul.f32 %v919, %v1046
        %v1056 = vmul.f32 %v924, %v1046
        %v1057 = vmul.f32 %v929, %v1046
        %v1058 = vmul.f32 %v934, %v1046
        %v1059 = vmul.f32 %v939, %v1046
        %v1060 = vmul.f32 %v944, %v1046
        %v1061 = vmul.f32 %v949, %v1046
        %v1062 = vmul.f32 %v954, %v1046
        %v1063 = vmul.f32 %v959, %v1046
        %v1064 = vmul.f32 %v964, %v1046
        %v1065 = vmul.f32 %v969, %v1046
        %v1066 = vmul.f32 %v974, %v1046
        %v1067 = vmul.f32 %v979, %v1046
        %v1068 = vmul.f32 %v984, %v1046
        %v1069 = vmul.f32 %v989, %v1046
        %v1070 = vmul.f32 %v994, %v1046
        %v1071 = vmul.f32 %v999, %v1046
        %v1072 = vmul.f32 %v1004, %v1046
        %v1073 = vmul.f32 %v1009, %v1046
        %v1074 = vmul.f32 %v1014, %v1046
        %v1075 = vmul.f32 %v1019, %v1046
        %v1076 = vmul.f32 %v1024, %v1046
        %v1077 = vmul.f32 %v1029, %v1046
        %v1078 = vmul.f32 %v1034, %v1046
        %v1079 = vmul.f32 %v1039, %v1046
        %v1081 = vlaneseq
        %v1082 = vshrl.u32 %v1081, 7
        %v1083 = vsub.s32 0, %v1082
        %v1084 = vrot.slane %v646, %v1083
        %v1086 = vadd.f32 %v1048, %v1084
        %v1087 = vadd.f32 %v1049, %v1084
        %v1088 = vadd.f32 %v1050, %v1084
        %v1089 = vadd.f32 %v1051, %v1084
        %v1090 = vadd.f32 %v1052, %v1084
        %v1091 = vadd.f32 %v1053, %v1084
        %v1092 = vadd.f32 %v1054, %v1084
        %v1093 = vadd.f32 %v1055, %v1084
        %v1094 = vadd.f32 %v1056, %v1084
        %v1095 = vadd.f32 %v1057, %v1084
        %v1096 = vadd.f32 %v1058, %v1084
        %v1097 = vadd.f32 %v1059, %v1084
        %v1098 = vadd.f32 %v1060, %v1084
        %v1099 = vadd.f32 %v1061, %v1084
        %v1100 = vadd.f32 %v1062, %v1084
        %v1101 = vadd.f32 %v1063, %v1084
        %v1102 = vadd.f32 %v1064, %v1084
        %v1103 = vadd.f32 %v1065, %v1084
        %v1104 = vadd.f32 %v1066, %v1084
        %v1105 = vadd.f32 %v1067, %v1084
        %v1106 = vadd.f32 %v1068, %v1084
        %v1107 = vadd.f32 %v1069, %v1084
        %v1108 = vadd.f32 %v1070, %v1084
        %v1109 = vadd.f32 %v1071, %v1084
        %v1110 = vadd.f32 %v1072, %v1084
        %v1111 = vadd.f32 %v1073, %v1084
        %v1112 = vadd.f32 %v1074, %v1084
        %v1113 = vadd.f32 %v1075, %v1084
        %v1114 = vadd.f32 %v1076, %v1084
        %v1115 = vadd.f32 %v1077, %v1084
        %v1116 = vadd.f32 %v1078, %v1084
        %v1117 = vadd.f32 %v1079, %v1084
        %v1118 = vmax.f32 %v1086, 0.0
        %v1119 = vmax.f32 %v1087, 0.0
        %v1120 = vmax.f32 %v1088, 0.0
        %v1121 = vmax.f32 %v1089, 0.0
        %v1122 = vmax.f32 %v1090, 0.0
        %v1123 = vmax.f32 %v1091, 0.0
        %v1124 = vmax.f32 %v1092, 0.0
        %v1125 = vmax.f32 %v1093, 0.0
        %v1126 = vmax.f32 %v1094, 0.0
        %v1127 = vmax.f32 %v1095, 0.0
        %v1128 = vmax.f32 %v1096, 0.0
        %v1129 = vmax.f32 %v1097, 0.0
        %v1130 = vmax.f32 %v1098, 0.0
        %v1131 = vmax.f32 %v1099, 0.0
        %v1132 = vmax.f32 %v1100, 0.0
        %v1133 = vmax.f32 %v1101, 0.0
        %v1134 = vmax.f32 %v1102, 0.0
        %v1135 = vmax.f32 %v1103, 0.0
        %v1136 = vmax.f32 %v1104, 0.0
        %v1137 = vmax.f32 %v1105, 0.0
        %v1138 = vmax.f32 %v1106, 0.0
        %v1139 = vmax.f32 %v1107, 0.0
        %v1140 = vmax.f32 %v1108, 0.0
        %v1141 = vmax.f32 %v1109, 0.0
        %v1142 = vmax.f32 %v1110, 0.0
        %v1143 = vmax.f32 %v1111, 0.0
        %v1144 = vmax.f32 %v1112, 0.0
        %v1145 = vmax.f32 %v1113, 0.0
        %v1146 = vmax.f32 %v1114, 0.0
        %v1147 = vmax.f32 %v1115, 0.0
        %v1148 = vmax.f32 %v1116, 0.0
        %v1149 = vmax.f32 %v1117, 0.0
        %vm1150 = vcmask 64512
        %v1151 = vsel %vm1150, %v1118, 0.0
        %v1152 = vsel %vm1150, %v1119, 0.0
        %v1153 = vadd.f32 %v1151, %v1152
        %v1154 = vsel %vm1150, %v1120, 0.0
        %v1155 = vadd.f32 %v1153, %v1154
        %v1156 = vsel %vm1150, %v1121, 0.0
        %v1157 = vadd.f32 %v1155, %v1156
        %v1158 = vsel %vm1150, %v1122, 0.0
        %v1159 = vadd.f32 %v1157, %v1158
        %v1160 = vsel %vm1150, %v1123, 0.0
        %v1161 = vadd.f32 %v1159, %v1160
        %v1162 = vsel %vm1150, %v1124, 0.0
        %v1163 = vadd.f32 %v1161, %v1162
        %v1164 = vsel %vm1150, %v1125, 0.0
        %v1165 = vadd.f32 %v1163, %v1164
        %v1166 = vsel %vm1150, %v1126, 0.0
        %v1167 = vadd.f32 %v1165, %v1166
        %v1168 = vsel %vm1150, %v1127, 0.0
        %v1169 = vadd.f32 %v1167, %v1168
        %v1170 = vsel %vm1150, %v1128, 0.0
        %v1171 = vadd.f32 %v1169, %v1170
        %v1172 = vsel %vm1150, %v1129, 0.0
        %v1173 = vadd.f32 %v1171, %v1172
        %v1174 = vsel %vm1150, %v1130, 0.0
        %v1175 = vadd.f32 %v1173, %v1174
        %v1176 = vsel %vm1150, %v1131, 0.0
        %v1177 = vadd.f32 %v1175, %v1176
        %v1178 = vsel %vm1150, %v1132, 0.0
        %v1179 = vadd.f32 %v1177, %v1178
        %v1180 = vsel %vm1150, %v1133, 0.0
        %v1181 = vadd.f32 %v1179, %v1180
        %v1182 = vsel %vm1150, %v1134, 0.0
        %v1183 = vadd.f32 %v1181, %v1182
        %v1184 = vsel %vm1150, %v1135, 0.0
        %v1185 = vadd.f32 %v1183, %v1184
        %v1186 = vsel %vm1150, %v1136, 0.0
        %v1187 = vadd.f32 %v1185, %v1186
        %v1188 = vsel %vm1150, %v1137, 0.0
        %v1189 = vadd.f32 %v1187, %v1188
        %v1190 = vsel %vm1150, %v1138, 0.0
        %v1191 = vadd.f32 %v1189, %v1190
        %v1192 = vsel %vm1150, %v1139, 0.0
        %v1193 = vadd.f32 %v1191, %v1192
        %v1194 = vsel %vm1150, %v1140, 0.0
        %v1195 = vadd.f32 %v1193, %v1194
        %v1196 = vsel %vm1150, %v1141, 0.0
        %v1197 = vadd.f32 %v1195, %v1196
        %v1198 = vsel %vm1150, %v1142, 0.0
        %v1199 = vadd.f32 %v1197, %v1198
        %v1200 = vsel %vm1150, %v1143, 0.0
        %v1201 = vadd.f32 %v1199, %v1200
        %v1202 = vsel %vm1150, %v1144, 0.0
        %v1203 = vadd.f32 %v1201, %v1202
        %v1204 = vsel %vm1150, %v1145, 0.0
        %v1205 = vadd.f32 %v1203, %v1204
        %v1206 = vsel %vm1150, %v1146, 0.0
        %v1207 = vadd.f32 %v1205, %v1206
        %v1208 = vsel %vm1150, %v1147, 0.0
        %v1209 = vadd.f32 %v1207, %v1208
        %v1210 = vsel %vm1150, %v1148, 0.0
        %v1211 = vadd.f32 %v1209, %v1210
        %v1212 = vsel %vm1150, %v1149, 0.0
        %v1213 = vadd.f32 %v1211, %v1212
        %v1214 = vrot.slane %v1213, 4
        %v1215 = vadd.f32 %v1213, %v1214
        %v1216 = vrot.slane %v1215, 2
        %v1217 = vadd.f32 %v1215, %v1216
        %v1218 = vrot.slane %v1217, 1
        %v1219 = vadd.f32 %v1217, %v1218
        %v1220 = vmul.f32 %v1219, 0.00390625
        %vm1221 = vcmask 57344
        %1222 = vst.msk [vmem:[%s389] sm:$0x1] %vm1221, %v1220
        %s1223 = sand.u32 %s274, 1
        %s1224 = scalar_lea.sflag [#allocation3], %s1223
        %s1225 = sand.u32 %s274, 1
        %s1226 = scalar_lea.vmem [#allocation2], %s1225
        // Predicated region
        $region65: #{tpu_custom_call.1} parent=63 // pred_check
          %p1227 = pneg %p284
        $region66: #{tpu_custom_call.1} parent=63 // pred_check_branch
          %1229 = sbr.rel (%p1227) target = $region68
        $region67: #{tpu_custom_call.1} parent=63 // pred_region
          %s1231 = ssub.s32 16, 16
          %1232 = vsyncadd %s1224, %s1231
          %s1233 = smul.addr %s25, 16
          %s1234 = scalar_lea.hbm %s11, %s1233
          %s1236 = sshll.u32 %s1226, 4
          %s1237 = int_to_ptr.vmem [resolvable:$true] %s1236
          %1239 = dma.vmem_to_hbm [thread:$0]  %s1237, 16, %s1234, %s1224
        $region68: #{tpu_custom_call.1} parent=63 // pred_fallthru
          _
      $region64: #{tpu_custom_call.1} parent=5 // pred_fallthru
        _
      %p1240 = scmp.le.s32.totalorder 2, %s20
      // Predicated region
      $region69: #{tpu_custom_call.1} parent=5 // pred_check
        %p1241 = pneg %p1240
      $region70: #{tpu_custom_call.1} parent=5 // pred_check_branch
        %1243 = sbr.rel (%p1241) target = $region72
      $region71: #{tpu_custom_call.1} parent=5 // pred_region
        %s1244 = ssub.s32 %s20, 2
        // Predicated region
        $region73: #{tpu_custom_call.1} parent=71 // pred_check
          %p1245 = pneg %p290
        $region74: #{tpu_custom_call.1} parent=71 // pred_check_branch
          %1247 = sbr.rel (%p1245) target = $region76
        $region75: #{tpu_custom_call.1} parent=71 // pred_region
          %s1248 = sand.u32 %s275, 1
          %s1249 = scalar_lea.sflag [#allocation3], %s1248
          %s1250 = sand.u32 %s275, 1
          %s1251 = scalar_lea.vmem [#allocation2], %s1250
          %1252 = dma.done %s1249, 16
        $region76: #{tpu_custom_call.1} parent=71 // pred_fallthru
          _
      $region72: #{tpu_custom_call.1} parent=5 // pred_fallthru
        _
    $region6: #{tpu_custom_call.1} parent=1 // loop_footer
      %s24 = sadd.s32 1, %s20
    $region7: #{tpu_custom_call.1} parent=1 // loop_footer_branch
      %19 = sbr.rel target = $region3
    $region8: #{tpu_custom_call.1} parent=1 // loop_exit
      _
    %1253 = vsyncpa [#allocation3], 1
    %s1254 = scalar_lea.sflag [#allocation3], 1
    %1255 = vsyncpa %s1254, 1

</llo_original>
